<compile_context>
chip_gen: v7x
topology: tpu7x:2x2x1
jax: 0.10.0
libtpu: 0.0.40
codegen_flags: <defaults>
</compile_context>

<pallas_src>
import functools

import jax
import jax.numpy as jnp
from jax.experimental import pallas as pl
from jax.experimental.pallas import tpu as pltpu


def _round_up(n, m):
    return ((n + m - 1) // m) * m


def _pad2(a, rows, cols):
    r, c = a.shape
    return jnp.pad(a, ((0, rows - r), (0, cols - c)))


def _pick_tile(b8, block_b):
    """Largest 8-aligned batch tile <= block_b that keeps grid length >= 2 (megacore)."""
    if b8 >= 2 * block_b:
        return block_b
    if b8 >= 16:
        half = _round_up((b8 + 1) // 2, 8)
        return min(half, block_b)
    return b8


def _vmem_ceiling_bytes():
    """~55% of physical VMEM (64 MiB on v7x, 128 MiB on v5e/v6e); safe fallback 32 MiB."""
    try:
        info = pltpu.get_tpu_info()
        cap = getattr(info, "vmem_capacity_bytes", None)
        if cap:
            return int(0.55 * cap)
    except Exception:
        pass
    return 32 * 1024 * 1024


def _autoencoder_kernel(x_ref, we1_ref, we2_ref, wd1_ref, wd2_ref, bias_ref,
                        out_ref, *, r_pad, i_pad):
    f32 = jnp.float32
    bf16 = jnp.bfloat16

    # Packed f32 bias/mask block (8, C): rows are be1, be2, bd1', bd2, mask.
    be1 = bias_ref[0:1, :r_pad]
    be2 = bias_ref[1:2, :r_pad]
    bd1 = bias_ref[2:3, :r_pad]
    bd2 = bias_ref[3:4, :i_pad]
    mask = bias_ref[4:5, :i_pad]   # 0 for valid feature lanes, -1e30 for padded lanes

    x = x_ref[...]  # (TB, I_pad) bf16

    # ---- Encoder: Linear -> ReLU -> Linear -> ReLU ----
    h = jnp.maximum(jnp.dot(x, we1_ref[...], preferred_element_type=f32) + be1, 0.0)
    h = jnp.maximum(
        jnp.dot(h.astype(bf16), we2_ref[...], preferred_element_type=f32) + be2, 0.0)

    # ---- Latent linear is folded into decoder linear 1 (no activation between) ----
    # ---- Decoder: Linear -> ReLU -> Linear -> ReLU ----
    h = jnp.maximum(
        jnp.dot(h.astype(bf16), wd1_ref[...], preferred_element_type=f32) + bd1, 0.0)
    h = jnp.maximum(
        jnp.dot(h.astype(bf16), wd2_ref[...], preferred_element_type=f32) + bd2, 0.0)

    # ---- log_softmax over dim=1, padded lanes excluded via additive mask row ----
    h = h + mask
    m = jnp.max(h, axis=1, keepdims=True)
    z = h - m
    lse = jnp.log(jnp.sum(jnp.exp(z), axis=1, keepdims=True))
    out_ref[...] = (z - lse).astype(out_ref.dtype)


def autoencoder_forward(x, params, *, block_b=512, out_dtype=jnp.float32):
    """x: (B, input_shape) f32. params: dict of unpadded weights/biases (see init_params)."""
    B, I = x.shape
    R = params["we1"].shape[1]

    # Lane-dense padded feature dims, 8-row-aligned batch tile, grid >= 2 when possible.
    I_pad = _round_up(I, 128)
    R_pad = _round_up(R, 128)
    B8 = _round_up(B, 8)
    TB = _pick_tile(B8, block_b)
    B_pad = _round_up(B8, TB)

    # --- Fold the activation-free latent linear into decoder linear 1 (in f32) ---
    wd1_folded = params["wl"] @ params["wd1"]                      # (R, R)
    bd1_folded = params["bl"] @ params["wd1"] + params["bd1"]      # (1, R)

    # Pad + cast at the boundary: bf16 matmul operands, f32 bias/mask pack.
    x_p = _pad2(x, B_pad, I_pad).astype(jnp.bfloat16)
    we1 = _pad2(params["we1"], I_pad, R_pad).astype(jnp.bfloat16)
    we2 = _pad2(params["we2"], R_pad, R_pad).astype(jnp.bfloat16)
    wd1 = _pad2(wd1_folded, R_pad, R_pad).astype(jnp.bfloat16)
    wd2 = _pad2(params["wd2"], R_pad, I_pad).astype(jnp.bfloat16)

    C = max(I_pad, R_pad)

    def _bias_row(b):
        b = b.reshape(1, -1).astype(jnp.float32)
        return jnp.pad(b, ((0, 0), (0, C - b.shape[1])))

    mask_row = jnp.where(jnp.arange(C)[None, :] < I, 0.0, -1e30).astype(jnp.float32)
    bias_pack = jnp.concatenate(
        [_bias_row(params["be1"]), _bias_row(params["be2"]),
         _bias_row(bd1_folded), _bias_row(params["bd2"]),
         mask_row, jnp.zeros((3, C), jnp.float32)], axis=0)       # (8, C)

    weights = (we1, we2, wd1, wd2, bias_pack)

    grid = (B_pad // TB,)

    x_spec = pl.BlockSpec((TB, I_pad), lambda i: (i, 0))
    out_spec = pl.BlockSpec((TB, I_pad), lambda i: (i, 0))
    # Constant index_map -> weights fetched once and kept VMEM-resident across the grid.
    # (pipeline_mode=pl.Buffered(1) would halve their footprint; irrelevant at this size.)
    w_specs = [pl.BlockSpec(w.shape, lambda i: (0, 0)) for w in weights]

    weight_bytes = sum(int(w.size) * w.dtype.itemsize for w in weights)
    out_itemsize = jnp.dtype(out_dtype).itemsize
    tile_bytes = 2 * (TB * I_pad * 2 + TB * I_pad * out_itemsize)  # double-buffered x + out
    vmem_limit = int(min(max(2 * (weight_bytes + tile_bytes), 16 * 1024 * 1024),
                         _vmem_ceiling_bytes()))

    # 4 matmuls after the fold: 2x (I_pad x R_pad), 2x (R_pad x R_pad).
    flops = 2 * B_pad * (2 * I_pad * R_pad + 2 * R_pad * R_pad)
    transcendentals = B_pad * I_pad + B_pad
    bytes_accessed = int(x_p.size) * 2 + B_pad * I_pad * out_itemsize + weight_bytes

    out_p = pl.pallas_call(
        functools.partial(_autoencoder_kernel, r_pad=R_pad, i_pad=I_pad),
        out_shape=jax.ShapeDtypeStruct((B_pad, I_pad), out_dtype),
        grid=grid,
        in_specs=[x_spec] + w_specs,
        out_specs=out_spec,
        compiler_params=pltpu.CompilerParams(
            dimension_semantics=("parallel",),
            vmem_limit_bytes=vmem_limit),
        cost_estimate=pl.CostEstimate(
            flops=int(flops),
            transcendentals=int(transcendentals),
            bytes_accessed=int(bytes_accessed)),
    )(x_p, *weights)

    return out_p[:B, :I]


def init_params(key, input_shape, reduction=0.5):
    """Deterministic init mimicking PyTorch nn.Linear default: U(-1/sqrt(fan_in), +)."""
    red = int(input_shape * reduction)

    def linear(key, fan_in, fan_out):
        kw, kb = jax.random.split(key)
        bound = 1.0 / jnp.sqrt(float(fan_in))
        w = jax.random.uniform(kw, (fan_in, fan_out), jnp.float32, -bound, bound)
        b = jax.random.uniform(kb, (1, fan_out), jnp.float32, -bound, bound)
        return w, b

    keys = jax.random.split(key, 5)
    we1, be1 = linear(keys[0], input_shape, red)   # encoder linear 1
    we2, be2 = linear(keys[1], red, red)           # encoder linear 2
    wl, bl = linear(keys[2], red, red)             # latent linear
    wd1, bd1 = linear(keys[3], red, red)           # decoder linear 1
    wd2, bd2 = linear(keys[4], red, input_shape)   # decoder linear 2
    return dict(we1=we1, be1=be1, we2=we2, be2=be2,
                wl=wl, bl=bl,
                wd1=wd1, bd1=bd1, wd2=wd2, bd2=bd2)


def reference_forward(x, p):
    """Pure-JAX reference mirroring the kernel math (f32 latent fold, bf16 operands)."""
    bf16 = jnp.bfloat16
    wd1_folded = p["wl"] @ p["wd1"]
    bd1_folded = p["bl"] @ p["wd1"] + p["bd1"]

    def lin(h, w, b):
        return jnp.dot(h.astype(bf16), w.astype(bf16),
                       preferred_element_type=jnp.float32) + b

    h = jax.nn.relu(lin(x, p["we1"], p["be1"]))
    h = jax.nn.relu(lin(h, p["we2"], p["be2"]))
    h = jax.nn.relu(lin(h, wd1_folded, bd1_folded))
    h = jax.nn.relu(lin(h, p["wd2"], p["bd2"]))
    return jax.nn.log_softmax(h, axis=1)


if __name__ == "__main__":
    batch = 256          # -> TB=128, grid=(2,): exercises the pipelined batch grid / megacore
    input_shape = 64
    reduction = 0.5

    key = jax.random.PRNGKey(0)
    kx, kp = jax.random.split(key)
    x = jax.random.normal(kx, (batch, input_shape), jnp.float32)
    params = init_params(kp, input_shape, reduction)

    out = jax.block_until_ready(autoencoder_forward(x, params))
    ref = reference_forward(x, params)

    assert out.shape == (batch, input_shape)
    assert bool(jnp.all(jnp.isfinite(out))), "non-finite values in kernel output"
    assert jnp.allclose(out, ref, atol=2e-3, rtol=2e-3), "mismatch vs reference"
    print("KERNEL_OK")
</pallas_src>

<mosaic_0001>
module attributes {stable_mosaic.version = 11 : i64} {
  func.func @_autoencoder_kernel(%arg0: i32, %arg1: memref<128x128xbf16, #tpu.memory_space<vmem>>, %arg2: memref<128x128xbf16, #tpu.memory_space<vmem>>, %arg3: memref<128x128xbf16, #tpu.memory_space<vmem>>, %arg4: memref<128x128xbf16, #tpu.memory_space<vmem>>, %arg5: memref<128x128xbf16, #tpu.memory_space<vmem>>, %arg6: memref<8x128xf32, #tpu.memory_space<vmem>>, %arg7: memref<128x128xf32, #tpu.memory_space<vmem>>) attributes {dimension_semantics = [#tpu.dimension_semantics<parallel>], iteration_bounds = array<i64: 2>, scalar_prefetch = 0 : i64, scratch_operands = 0 : i64, tpu.core_type = #tpu.core_type<tc>, window_params = [{transform_indices = @transform_0, window_bounds = array<i64: 128, 128>}, {pipeline_mode = #tpu.pipeline_mode<synchronous>, transform_indices = @transform_1, window_bounds = array<i64: 128, 128>}, {pipeline_mode = #tpu.pipeline_mode<synchronous>, transform_indices = @transform_2, window_bounds = array<i64: 128, 128>}, {pipeline_mode = #tpu.pipeline_mode<synchronous>, transform_indices = @transform_3, window_bounds = array<i64: 128, 128>}, {pipeline_mode = #tpu.pipeline_mode<synchronous>, transform_indices = @transform_4, window_bounds = array<i64: 128, 128>}, {pipeline_mode = #tpu.pipeline_mode<synchronous>, transform_indices = @transform_5, window_bounds = array<i64: 8, 128>}, {transform_indices = @transform_6, window_bounds = array<i64: 128, 128>}]} {
    %c0 = arith.constant 0 : index
    %c0_0 = arith.constant 0 : index
    %0 = vector.load %arg6[%c0, %c0_0] : memref<8x128xf32, #tpu.memory_space<vmem>>, vector<1x128xf32>
    %c1 = arith.constant 1 : index
    %c0_1 = arith.constant 0 : index
    %1 = vector.load %arg6[%c1, %c0_1] : memref<8x128xf32, #tpu.memory_space<vmem>>, vector<1x128xf32>
    %c2 = arith.constant 2 : index
    %c0_2 = arith.constant 0 : index
    %2 = vector.load %arg6[%c2, %c0_2] : memref<8x128xf32, #tpu.memory_space<vmem>>, vector<1x128xf32>
    %c3 = arith.constant 3 : index
    %c0_3 = arith.constant 0 : index
    %3 = vector.load %arg6[%c3, %c0_3] : memref<8x128xf32, #tpu.memory_space<vmem>>, vector<1x128xf32>
    %c4 = arith.constant 4 : index
    %c0_4 = arith.constant 0 : index
    %4 = vector.load %arg6[%c4, %c0_4] : memref<8x128xf32, #tpu.memory_space<vmem>>, vector<1x128xf32>
    %c0_5 = arith.constant 0 : index
    %c0_6 = arith.constant 0 : index
    %5 = vector.load %arg1[%c0_5, %c0_6] : memref<128x128xbf16, #tpu.memory_space<vmem>>, vector<128x128xbf16>
    %c0_7 = arith.constant 0 : index
    %c0_8 = arith.constant 0 : index
    %6 = vector.load %arg2[%c0_7, %c0_8] : memref<128x128xbf16, #tpu.memory_space<vmem>>, vector<128x128xbf16>
    %cst = arith.constant dense<0.000000e+00> : vector<128x128xf32>
    %7 = tpu.matmul %5, %6, %cst {dimension_numbers = #tpu.dot_dimension_numbers<[1], [0], [0], [1], [0, 0, 1, 1], [], []>} : vector<128x128xbf16>, vector<128x128xbf16>, vector<128x128xf32> -> vector<128x128xf32>
    %8 = vector.broadcast %0 : vector<1x128xf32> to vector<128x128xf32>
    %9 = arith.addf %7, %8 : vector<128x128xf32>
    %cst_9 = arith.constant 0.000000e+00 : f32
    %10 = vector.broadcast %cst_9 : f32 to vector<128x128xf32>
    %11 = arith.maximumf %9, %10 : vector<128x128xf32>
    %12 = arith.truncf %11 : vector<128x128xf32> to vector<128x128xbf16>
    %c0_10 = arith.constant 0 : index
    %c0_11 = arith.constant 0 : index
    %13 = vector.load %arg3[%c0_10, %c0_11] : memref<128x128xbf16, #tpu.memory_space<vmem>>, vector<128x128xbf16>
    %cst_12 = arith.constant dense<0.000000e+00> : vector<128x128xf32>
    %14 = tpu.matmul %12, %13, %cst_12 {dimension_numbers = #tpu.dot_dimension_numbers<[1], [0], [0], [1], [0, 0, 1, 1], [], []>} : vector<128x128xbf16>, vector<128x128xbf16>, vector<128x128xf32> -> vector<128x128xf32>
    %15 = vector.broadcast %1 : vector<1x128xf32> to vector<128x128xf32>
    %16 = arith.addf %14, %15 : vector<128x128xf32>
    %cst_13 = arith.constant 0.000000e+00 : f32
    %17 = vector.broadcast %cst_13 : f32 to vector<128x128xf32>
    %18 = arith.maximumf %16, %17 : vector<128x128xf32>
    %19 = arith.truncf %18 : vector<128x128xf32> to vector<128x128xbf16>
    %c0_14 = arith.constant 0 : index
    %c0_15 = arith.constant 0 : index
    %20 = vector.load %arg4[%c0_14, %c0_15] : memref<128x128xbf16, #tpu.memory_space<vmem>>, vector<128x128xbf16>
    %cst_16 = arith.constant dense<0.000000e+00> : vector<128x128xf32>
    %21 = tpu.matmul %19, %20, %cst_16 {dimension_numbers = #tpu.dot_dimension_numbers<[1], [0], [0], [1], [0, 0, 1, 1], [], []>} : vector<128x128xbf16>, vector<128x128xbf16>, vector<128x128xf32> -> vector<128x128xf32>
    %22 = vector.broadcast %2 : vector<1x128xf32> to vector<128x128xf32>
    %23 = arith.addf %21, %22 : vector<128x128xf32>
    %cst_17 = arith.constant 0.000000e+00 : f32
    %24 = vector.broadcast %cst_17 : f32 to vector<128x128xf32>
    %25 = arith.maximumf %23, %24 : vector<128x128xf32>
    %26 = arith.truncf %25 : vector<128x128xf32> to vector<128x128xbf16>
    %c0_18 = arith.constant 0 : index
    %c0_19 = arith.constant 0 : index
    %27 = vector.load %arg5[%c0_18, %c0_19] : memref<128x128xbf16, #tpu.memory_space<vmem>>, vector<128x128xbf16>
    %cst_20 = arith.constant dense<0.000000e+00> : vector<128x128xf32>
    %28 = tpu.matmul %26, %27, %cst_20 {dimension_numbers = #tpu.dot_dimension_numbers<[1], [0], [0], [1], [0, 0, 1, 1], [], []>} : vector<128x128xbf16>, vector<128x128xbf16>, vector<128x128xf32> -> vector<128x128xf32>
    %29 = vector.broadcast %3 : vector<1x128xf32> to vector<128x128xf32>
    %30 = arith.addf %28, %29 : vector<128x128xf32>
    %cst_21 = arith.constant 0.000000e+00 : f32
    %31 = vector.broadcast %cst_21 : f32 to vector<128x128xf32>
    %32 = arith.maximumf %30, %31 : vector<128x128xf32>
    %33 = vector.broadcast %4 : vector<1x128xf32> to vector<128x128xf32>
    %34 = arith.addf %32, %33 : vector<128x128xf32>
    %cst_22 = arith.constant dense<0xFF800000> : vector<128xf32>
    %35 = vector.multi_reduction <maximumf>, %34, %cst_22 [1] : vector<128x128xf32> to vector<128xf32>
    %36 = vector.shape_cast %35 : vector<128xf32> to vector<128x1xf32>
    %37 = vector.broadcast %36 : vector<128x1xf32> to vector<128x128xf32>
    %38 = arith.subf %34, %37 : vector<128x128xf32>
    %39 = math.exp %38 : vector<128x128xf32>
    %cst_23 = arith.constant dense<0.000000e+00> : vector<128xf32>
    %40 = vector.multi_reduction <add>, %39, %cst_23 [1] : vector<128x128xf32> to vector<128xf32>
    %41 = vector.shape_cast %40 : vector<128xf32> to vector<128x1xf32>
    %42 = math.log %41 : vector<128x1xf32>
    %43 = vector.broadcast %42 : vector<128x1xf32> to vector<128x128xf32>
    %44 = arith.subf %38, %43 : vector<128x128xf32>
    %c0_24 = arith.constant 0 : index
    %c0_25 = arith.constant 0 : index
    %45 = vector.load %arg7[%c0_24, %c0_25] : memref<128x128xf32, #tpu.memory_space<vmem>>, vector<128x128xf32>
    tpu.vector_store %arg7[%c0_24, %c0_25], %44 {strides = array<i32>} : memref<128x128xf32, #tpu.memory_space<vmem>>, vector<128x128xf32>,
    return
  }
  func.func @transform_0(%arg0: i32) -> (i32, i32) {
    %c0_i32 = arith.constant 0 : i32
    %c0_i32_0 = arith.constant 0 : i32
    return %arg0, %c0_i32 : i32, i32
  }
  func.func @transform_1(%arg0: i32) -> (i32, i32) {
    %c0_i32 = arith.constant 0 : i32
    %c0_i32_0 = arith.constant 0 : i32
    %c0_i32_1 = arith.constant 0 : i32
    return %c0_i32, %c0_i32_0 : i32, i32
  }
  func.func @transform_2(%arg0: i32) -> (i32, i32) {
    %c0_i32 = arith.constant 0 : i32
    %c0_i32_0 = arith.constant 0 : i32
    %c0_i32_1 = arith.constant 0 : i32
    return %c0_i32, %c0_i32_0 : i32, i32
  }
  func.func @transform_3(%arg0: i32) -> (i32, i32) {
    %c0_i32 = arith.constant 0 : i32
    %c0_i32_0 = arith.constant 0 : i32
    %c0_i32_1 = arith.constant 0 : i32
    return %c0_i32, %c0_i32_0 : i32, i32
  }
  func.func @transform_4(%arg0: i32) -> (i32, i32) {
    %c0_i32 = arith.constant 0 : i32
    %c0_i32_0 = arith.constant 0 : i32
    %c0_i32_1 = arith.constant 0 : i32
    return %c0_i32, %c0_i32_0 : i32, i32
  }
  func.func @transform_5(%arg0: i32) -> (i32, i32) {
    %c0_i32 = arith.constant 0 : i32
    %c0_i32_0 = arith.constant 0 : i32
    %c0_i32_1 = arith.constant 0 : i32
    return %c0_i32, %c0_i32_0 : i32, i32
  }
  func.func @transform_6(%arg0: i32) -> (i32, i32) {
    %c0_i32 = arith.constant 0 : i32
    %c0_i32_0 = arith.constant 0 : i32
    return %arg0, %c0_i32 : i32, i32
  }
}

</mosaic_0001>

<llo_original>
// kernel: tpu_custom_call.1
$region0: #{tpu_custom_call.1}
  #allocation0 [shape = 'u32[]', space=smem, size = 0x4, offset = 0x4, fixed_abs, tag = 'smem constant byte address 0x4 - core index']
  #allocation1 [shape = 'u32[144,128]{1,0:T(1,128)}', space=vmem, size = 0x12000, scoped, tag = 'internal scratch']
  %s0 = inlined_call_operand.hbm [shape: bf16[256,128], index: 0, kind: input, shape index: {}]
  %s1 = inlined_call_operand.hbm [shape: bf16[128,128], index: 1, kind: input, shape index: {}]
  %s2 = inlined_call_operand.hbm [shape: bf16[128,128], index: 2, kind: input, shape index: {}]
  %s3 = inlined_call_operand.hbm [shape: bf16[128,128], index: 3, kind: input, shape index: {}]
  %s4 = inlined_call_operand.hbm [shape: bf16[128,128], index: 4, kind: input, shape index: {}]
  %s5 = inlined_call_operand.vmem [shape: f32[8,128], index: 5, kind: input, shape index: {}]
  %s6 = inlined_call_operand.hbm [shape: f32[256,128], index: 6, kind: output, shape index: {}]
  %s7 = sld [smem:[#allocation0]]
  $region77: #{tpu_custom_call.1} parent=0
    _
  %s9 = ssub.s32 1, %s7
  %s10 = scalar_select 0, %s9, %s7
  $region1: #{tpu_custom_call.1} parent=0
    #allocation2 [shape = 'u8[65536]{0}', space=vmem, size = 0x10000, scoped, tag = 'input window, operand 0']
    #allocation3 [shape = 's32[2]{0}', space=sflag, size = 0x8, scoped, tag = 'scoped memory for tpu_custom_call.1']
    #allocation4 [shape = 's32[2]{0}', space=sflag, size = 0x8, scoped, tag = 'scoped memory for tpu_custom_call.1']
    #allocation5 [shape = 'u8[32768]{0}', space=vmem, size = 0x8000, scoped, tag = 'input window, operand 1, single buffered']
    #allocation6 [shape = 's32[1]{0}', space=sflag, size = 0x4, scoped, tag = 'scoped memory for tpu_custom_call.1']
    #allocation7 [shape = 'u8[32768]{0}', space=vmem, size = 0x8000, scoped, tag = 'input window, operand 2, single buffered']
    #allocation8 [shape = 'u8[32768]{0}', space=vmem, size = 0x8000, scoped, tag = 'input window, operand 3, single buffered']
    #allocation9 [shape = 's32[1]{0}', space=sflag, size = 0x4, scoped, tag = 'scoped memory for tpu_custom_call.1']
    #allocation10 [shape = 'u8[32768]{0}', space=vmem, size = 0x8000, scoped, tag = 'input window, operand 4, single buffered']
    #allocation11 [shape = 'u8[131072]{0}', space=vmem, size = 0x20000, scoped, tag = 'output window, operand 0']
    %11 = vsyncpa [#allocation3], 0
    %s12 = scalar_lea.sflag [#allocation3], 1
    %13 = vsyncpa %s12, 0
    %14 = vsyncpa [#allocation6], 0
    %15 = vsyncpa [#allocation9], 0
    %16 = vsyncpa [#allocation4], 0
    %s17 = scalar_lea.sflag [#allocation4], 1
    %18 = vsyncpa %s17, 0
    loop: start=0, step=1, limit=4
    $region2: #{tpu_custom_call.1} parent=1 // loop_pre_header
      _
    $region3: #{tpu_custom_call.1} parent=1 // loop_header
      %s20 = sphi 0, %s24
      %p21 = scmp.ge.s32.totalorder %s20, 4
      %s30 = sphi 0, %s32
      %s33 = sphi 0, %s30
      %s34 = sphi 0, %s33
      %s50 = sphi 0, %s34
      %s54 = sphi 0, %s54
      %s56 = sphi 0, %s54
      %s57 = sphi 0, %s56
      %s71 = sphi 0, %s57
      %s75 = sphi 0, %s75
      %s77 = sphi 0, %s75
      %s78 = sphi 0, %s77
      %s92 = sphi 0, %s78
      %s96 = sphi 0, %s96
      %s98 = sphi 0, %s96
      %s99 = sphi 0, %s98
      %s113 = sphi 0, %s99
      %s117 = sphi 0, %s117
      %s119 = sphi 0, %s117
      %s120 = sphi 0, %s119
      %s134 = sphi 0, %s120
      %s138 = sphi 0, %s138
      %s140 = sphi 0, %s138
      %s141 = sphi 0, %s140
      %s155 = sphi 0, %s141
      %s161 = sphi 0, %s163
      %s164 = sphi 0, %s161
      %s165 = sphi 0, %s164
      %s181 = sphi 0, %s165
    $region4: #{tpu_custom_call.1} parent=1 // loop_header_branch
      %23 = sbr.rel (%p21) target = $region8
    $region5: #{tpu_custom_call.1} parent=1 // loop_body
      %s25 = ssub.s32 %s20, 1
      %s26 = ssub.s32 %s20, 2
      %s27 = sadd.s32 %s20, 1
      %s28 = ssub.s32 %s20, %s27
      %p29 = scmp.eq.s32.totalorder %s28, 0
      %s31 = sadd.s32 %s30, 1
      %s32 = scalar_select %p29, %s30, %s31
      %p35 = pneg %p29
      %p36 = scmp.eq.s32.totalorder %s20, 1
      %p37 = por %p35, %p36
      %p38 = scmp.ne.s32.totalorder %s30, %s33
      %p39 = scmp.eq.s32.totalorder %s20, 0
      %p40 = por %p38, %p39
      %p41 = scmp.ne.s32.totalorder %s30, %s33
      %p42 = scmp.eq.s32.totalorder %s25, 1
      %p43 = por %p41, %p42
      %p44 = scmp.ne.s32.totalorder %s33, %s34
      %p45 = scmp.eq.s32.totalorder %s25, 0
      %p46 = por %p44, %p45
      %p47 = scmp.ne.s32.totalorder %s33, %s34
      %p48 = scmp.eq.s32.totalorder %s26, 1
      %p49 = por %p47, %p48
      %p51 = scmp.ne.s32.totalorder %s34, %s50
      %p52 = scmp.eq.s32.totalorder %s26, 0
      %p53 = por %p51, %p52
      %s55 = sadd.s32 %s54, 1
      %p58 = scmp.eq.s32.totalorder %s20, 1
      %p59 = scmp.ne.s32.totalorder %s54, %s56
      %p60 = scmp.eq.s32.totalorder %s20, 0
      %p61 = por %p59, %p60
      %p62 = scmp.ne.s32.totalorder %s54, %s56
      %p63 = scmp.eq.s32.totalorder %s25, 1
      %p64 = por %p62, %p63
      %p65 = scmp.ne.s32.totalorder %s56, %s57
      %p66 = scmp.eq.s32.totalorder %s25, 0
      %p67 = por %p65, %p66
      %p68 = scmp.ne.s32.totalorder %s56, %s57
      %p69 = scmp.eq.s32.totalorder %s26, 1
      %p70 = por %p68, %p69
      %p72 = scmp.ne.s32.totalorder %s57, %s71
      %p73 = scmp.eq.s32.totalorder %s26, 0
      %p74 = por %p72, %p73
      %s76 = sadd.s32 %s75, 1
      %p79 = scmp.eq.s32.totalorder %s20, 1
      %p80 = scmp.ne.s32.totalorder %s75, %s77
      %p81 = scmp.eq.s32.totalorder %s20, 0
      %p82 = por %p80, %p81
      %p83 = scmp.ne.s32.totalorder %s75, %s77
      %p84 = scmp.eq.s32.totalorder %s25, 1
      %p85 = por %p83, %p84
      %p86 = scmp.ne.s32.totalorder %s77, %s78
      %p87 = scmp.eq.s32.totalorder %s25, 0
      %p88 = por %p86, %p87
      %p89 = scmp.ne.s32.totalorder %s77, %s78
      %p90 = scmp.eq.s32.totalorder %s26, 1
      %p91 = por %p89, %p90
      %p93 = scmp.ne.s32.totalorder %s78, %s92
      %p94 = scmp.eq.s32.totalorder %s26, 0
      %p95 = por %p93, %p94
      %s97 = sadd.s32 %s96, 1
      %p100 = scmp.eq.s32.totalorder %s20, 1
      %p101 = scmp.ne.s32.totalorder %s96, %s98
      %p102 = scmp.eq.s32.totalorder %s20, 0
      %p103 = por %p101, %p102
      %p104 = scmp.ne.s32.totalorder %s96, %s98
      %p105 = scmp.eq.s32.totalorder %s25, 1
      %p106 = por %p104, %p105
      %p107 = scmp.ne.s32.totalorder %s98, %s99
      %p108 = scmp.eq.s32.totalorder %s25, 0
      %p109 = por %p107, %p108
      %p110 = scmp.ne.s32.totalorder %s98, %s99
      %p111 = scmp.eq.s32.totalorder %s26, 1
      %p112 = por %p110, %p111
      %p114 = scmp.ne.s32.totalorder %s99, %s113
      %p115 = scmp.eq.s32.totalorder %s26, 0
      %p116 = por %p114, %p115
      %s118 = sadd.s32 %s117, 1
      %p121 = scmp.eq.s32.totalorder %s20, 1
      %p122 = scmp.ne.s32.totalorder %s117, %s119
      %p123 = scmp.eq.s32.totalorder %s20, 0
      %p124 = por %p122, %p123
      %p125 = scmp.ne.s32.totalorder %s117, %s119
      %p126 = scmp.eq.s32.totalorder %s25, 1
      %p127 = por %p125, %p126
      %p128 = scmp.ne.s32.totalorder %s119, %s120
      %p129 = scmp.eq.s32.totalorder %s25, 0
      %p130 = por %p128, %p129
      %p131 = scmp.ne.s32.totalorder %s119, %s120
      %p132 = scmp.eq.s32.totalorder %s26, 1
      %p133 = por %p131, %p132
      %p135 = scmp.ne.s32.totalorder %s120, %s134
      %p136 = scmp.eq.s32.totalorder %s26, 0
      %p137 = por %p135, %p136
      %s139 = sadd.s32 %s138, 1
      %p142 = scmp.eq.s32.totalorder %s20, 1
      %p143 = scmp.ne.s32.totalorder %s138, %s140
      %p144 = scmp.eq.s32.totalorder %s20, 0
      %p145 = por %p143, %p144
      %p146 = scmp.ne.s32.totalorder %s138, %s140
      %p147 = scmp.eq.s32.totalorder %s25, 1
      %p148 = por %p146, %p147
      %p149 = scmp.ne.s32.totalorder %s140, %s141
      %p150 = scmp.eq.s32.totalorder %s25, 0
      %p151 = por %p149, %p150
      %p152 = scmp.ne.s32.totalorder %s140, %s141
      %p153 = scmp.eq.s32.totalorder %s26, 1
      %p154 = por %p152, %p153
      %p156 = scmp.ne.s32.totalorder %s141, %s155
      %p157 = scmp.eq.s32.totalorder %s26, 0
      %p158 = por %p156, %p157
      %s159 = ssub.s32 %s20, %s27
      %p160 = scmp.eq.s32.totalorder %s159, 0
      %s162 = sadd.s32 %s161, 1
      %s163 = scalar_select %p160, %s161, %s162
      %p166 = pneg %p160
      %p167 = scmp.eq.s32.totalorder %s20, 1
      %p168 = por %p166, %p167
      %p169 = scmp.ne.s32.totalorder %s161, %s164
      %p170 = scmp.eq.s32.totalorder %s20, 0
      %p171 = por %p169, %p170
      %p172 = scmp.ne.s32.totalorder %s161, %s164
      %p173 = scmp.eq.s32.totalorder %s25, 1
      %p174 = por %p172, %p173
      %p175 = scmp.ne.s32.totalorder %s164, %s165
      %p176 = scmp.eq.s32.totalorder %s25, 0
      %p177 = por %p175, %p176
      %p178 = scmp.ne.s32.totalorder %s164, %s165
      %p179 = scmp.eq.s32.totalorder %s26, 1
      %p180 = por %p178, %p179
      %p182 = scmp.ne.s32.totalorder %s165, %s181
      %p183 = scmp.eq.s32.totalorder %s26, 0
      %p184 = por %p182, %p183
      %p185 = scmp.le.s32.totalorder 1, %s20
      %p186 = scmp.lt.s32.totalorder %s20, 3
      %p187 = pnand %p185, %p186
      %p188 = pneg %p187
      // Predicated region
      $region9: #{tpu_custom_call.1} parent=5 // pred_check
        _
      $region10: #{tpu_custom_call.1} parent=5 // pred_check_branch
        %190 = sbr.rel (%p187) target = $region12
      $region11: #{tpu_custom_call.1} parent=5 // pred_region
        %s191 = ssub.s32 %s20, 1
        // Predicated region
        $region13: #{tpu_custom_call.1} parent=11 // pred_check
          %p192 = pneg %p67
        $region14: #{tpu_custom_call.1} parent=11 // pred_check_branch
          %194 = sbr.rel (%p192) target = $region16
        $region15: #{tpu_custom_call.1} parent=11 // pred_region
          %s196 = ssub.s32 1024, 1024
          %197 = vsyncadd [#allocation6], %s196
          %s198 = sshll.u32 [#allocation5], 4
          %s199 = int_to_ptr.vmem [resolvable:$true] %s198
          %204 = dma.hbm_to_vmem [thread:$0]  %s1, 1024, %s199, [#allocation6], 64, 64, 4
        $region16: #{tpu_custom_call.1} parent=11 // pred_fallthru
          _
        // Predicated region
        $region17: #{tpu_custom_call.1} parent=11 // pred_check
          %p205 = pneg %p88
        $region18: #{tpu_custom_call.1} parent=11 // pred_check_branch
          %207 = sbr.rel (%p205) target = $region20
        $region19: #{tpu_custom_call.1} parent=11 // pred_region
          %s209 = ssub.s32 1024, 1024
          %210 = vsyncadd [#allocation6], %s209
          %s211 = sshll.u32 [#allocation7], 4
          %s212 = int_to_ptr.vmem [resolvable:$true] %s211
          %217 = dma.hbm_to_vmem [thread:$0]  %s2, 1024, %s212, [#allocation6], 64, 64, 4
        $region20: #{tpu_custom_call.1} parent=11 // pred_fallthru
          _
        // Predicated region
        $region21: #{tpu_custom_call.1} parent=11 // pred_check
          %p218 = pneg %p109
        $region22: #{tpu_custom_call.1} parent=11 // pred_check_branch
          %220 = sbr.rel (%p218) target = $region24
        $region23: #{tpu_custom_call.1} parent=11 // pred_region
          %s222 = ssub.s32 1024, 1024
          %223 = vsyncadd [#allocation9], %s222
          %s224 = sshll.u32 [#allocation8], 4
          %s225 = int_to_ptr.vmem [resolvable:$true] %s224
          %230 = dma.hbm_to_vmem [thread:$0]  %s3, 1024, %s225, [#allocation9], 64, 64, 4
        $region24: #{tpu_custom_call.1} parent=11 // pred_fallthru
          _
        // Predicated region
        $region25: #{tpu_custom_call.1} parent=11 // pred_check
          %p231 = pneg %p130
        $region26: #{tpu_custom_call.1} parent=11 // pred_check_branch
          %233 = sbr.rel (%p231) target = $region28
        $region27: #{tpu_custom_call.1} parent=11 // pred_region
          %s235 = ssub.s32 1024, 1024
          %236 = vsyncadd [#allocation9], %s235
          %s237 = sshll.u32 [#allocation10], 4
          %s238 = int_to_ptr.vmem [resolvable:$true] %s237
          %243 = dma.hbm_to_vmem [thread:$0]  %s4, 1024, %s238, [#allocation9], 64, 64, 4
        $region28: #{tpu_custom_call.1} parent=11 // pred_fallthru
          _
        // Predicated region
        $region29: #{tpu_custom_call.1} parent=11 // pred_check
          %p244 = pneg %p151
        $region30: #{tpu_custom_call.1} parent=11 // pred_check_branch
          %246 = sbr.rel (%p244) target = $region32
        $region31: #{tpu_custom_call.1} parent=11 // pred_region
          _
        $region32: #{tpu_custom_call.1} parent=11 // pred_fallthru
          _
      $region12: #{tpu_custom_call.1} parent=5 // pred_fallthru
        _
      %p247 = scmp.lt.s32.totalorder %s20, 2
      // Predicated region
      $region33: #{tpu_custom_call.1} parent=5 // pred_check
        %p248 = pneg %p247
      $region34: #{tpu_custom_call.1} parent=5 // pred_check_branch
        %250 = sbr.rel (%p248) target = $region36
      $region35: #{tpu_custom_call.1} parent=5 // pred_region
        // Predicated region
        $region37: #{tpu_custom_call.1} parent=35 // pred_check
          %p251 = pneg %p40
        $region38: #{tpu_custom_call.1} parent=35 // pred_check_branch
          %253 = sbr.rel (%p251) target = $region40
        $region39: #{tpu_custom_call.1} parent=35 // pred_region
          %s254 = sand.u32 %s30, 1
          %s255 = scalar_lea.sflag [#allocation3], %s254
          %s256 = sand.u32 %s30, 1
          %s257 = smul.addr %s256, 64
          %s258 = scalar_lea.vmem [#allocation2], %s257
          %s259 = smul.u32 16, %s20
          %s261 = ssub.s32 1024, 1024
          %262 = vsyncadd %s255, %s261
          %s263 = smul.addr %s259, 64
          %s264 = scalar_lea.hbm %s0, %s263
          %s265 = sshll.u32 %s258, 4
          %s266 = int_to_ptr.vmem [resolvable:$true] %s265
          %271 = dma.hbm_to_vmem [thread:$0]  %s264, 1024, %s266, %s255, 64, 64, 4
        $region40: #{tpu_custom_call.1} parent=35 // pred_fallthru
          _
      $region36: #{tpu_custom_call.1} parent=5 // pred_fallthru
        _
      %p272 = scmp.le.s32.totalorder 1, %s20
      %p273 = scmp.lt.s32.totalorder %s20, 3
      %p274 = pnand %p272, %p273
      %p275 = pneg %p274
      // Predicated region
      $region41: #{tpu_custom_call.1} parent=5 // pred_check
        _
      $region42: #{tpu_custom_call.1} parent=5 // pred_check_branch
        %277 = sbr.rel (%p274) target = $region44
      $region43: #{tpu_custom_call.1} parent=5 // pred_region
        %s278 = ssub.s32 %s20, 1
        %s279 = sand.u32 %s33, 1
        %s280 = scalar_lea.sflag [#allocation3], %s279
        %s281 = sand.u32 %s33, 1
        %s282 = smul.addr %s281, 64
        %s283 = scalar_lea.vmem [#allocation2], %s282
        // Predicated region
        $region45: #{tpu_custom_call.1} parent=43 // pred_check
          %p284 = pneg %p46
        $region46: #{tpu_custom_call.1} parent=43 // pred_check_branch
          %286 = sbr.rel (%p284) target = $region48
        $region47: #{tpu_custom_call.1} parent=43 // pred_region
          %287 = dma.done %s280, 1024
        $region48: #{tpu_custom_call.1} parent=43 // pred_fallthru
          _
        // Predicated region
        $region49: #{tpu_custom_call.1} parent=43 // pred_check
          %p288 = pneg %p67
        $region50: #{tpu_custom_call.1} parent=43 // pred_check_branch
          %290 = sbr.rel (%p288) target = $region52
        $region51: #{tpu_custom_call.1} parent=43 // pred_region
          %291 = dma.done [#allocation6], 1024
        $region52: #{tpu_custom_call.1} parent=43 // pred_fallthru
          _
        // Predicated region
        $region53: #{tpu_custom_call.1} parent=43 // pred_check
          %p292 = pneg %p88
        $region54: #{tpu_custom_call.1} parent=43 // pred_check_branch
          %294 = sbr.rel (%p292) target = $region56
        $region55: #{tpu_custom_call.1} parent=43 // pred_region
          %295 = dma.done [#allocation6], 1024
        $region56: #{tpu_custom_call.1} parent=43 // pred_fallthru
          _
        // Predicated region
        $region57: #{tpu_custom_call.1} parent=43 // pred_check
          %p296 = pneg %p109
        $region58: #{tpu_custom_call.1} parent=43 // pred_check_branch
          %298 = sbr.rel (%p296) target = $region60
        $region59: #{tpu_custom_call.1} parent=43 // pred_region
          %299 = dma.done [#allocation9], 1024
        $region60: #{tpu_custom_call.1} parent=43 // pred_fallthru
          _
        // Predicated region
        $region61: #{tpu_custom_call.1} parent=43 // pred_check
          %p300 = pneg %p130
        $region62: #{tpu_custom_call.1} parent=43 // pred_check_branch
          %302 = sbr.rel (%p300) target = $region64
        $region63: #{tpu_custom_call.1} parent=43 // pred_region
          %303 = dma.done [#allocation9], 1024
        $region64: #{tpu_custom_call.1} parent=43 // pred_fallthru
          _
        %s304 = sand.u32 %s33, 1
        %s305 = scalar_lea.sflag [#allocation3], %s304
        %s306 = sand.u32 %s33, 1
        %s307 = smul.addr %s306, 64
        %s308 = scalar_lea.vmem [#allocation2], %s307
        %p309 = pneg %p46
        %p310 = pneg %p43
        %p311 = pneg %p67
        %p312 = pneg %p64
        %p313 = pneg %p88
        %p314 = pneg %p85
        %p315 = pneg %p109
        %p316 = pneg %p106
        %p317 = pneg %p130
        %p318 = pneg %p127
        %p319 = pneg %p151
        %p320 = pneg %p148
        %p321 = pneg %p177
        %p322 = pneg %p174
        %s323 = sand.u32 %s164, 1
        %s324 = scalar_lea.sflag [#allocation4], %s323
        %s325 = sand.u32 %s164, 1
        %s326 = smul.addr %s325, 128
        %s327 = scalar_lea.vmem [#allocation11], %s326
        %s328 = smul.u32 16, %s25
        %s329 = smul.u32 16, %s25
        %v331 = vld [vmem:[%s5] sm:$0x1]
        %v332 = vld [vmem:[%s5 + $0x1] sm:$0x1]
        %v333 = vld [vmem:[%s5 + $0x2] sm:$0x1]
        %v334 = vld [vmem:[%s5 + $0x3] sm:$0x1]
        %v335 = vld [vmem:[%s5 + $0x4] sm:$0x1]
        %v336 = vld [vmem:[%s283] sm:$0xf]
        %v337 = vld [vmem:[%s283 + $0x4] sm:$0xf]
        %v338 = vld [vmem:[%s283 + $0x8] sm:$0xf]
        %v339 = vld [vmem:[%s283 + $0xc] sm:$0xf]
        %v340 = vld [vmem:[%s283 + $0x10] sm:$0xf]
        %v341 = vld [vmem:[%s283 + $0x14] sm:$0xf]
        %v342 = vld [vmem:[%s283 + $0x18] sm:$0xf]
        %v343 = vld [vmem:[%s283 + $0x1c] sm:$0xf]
        %v344 = vld [vmem:[%s283 + $0x20] sm:$0xf]
        %v345 = vld [vmem:[%s283 + $0x24] sm:$0xf]
        %v346 = vld [vmem:[%s283 + $0x28] sm:$0xf]
        %v347 = vld [vmem:[%s283 + $0x2c] sm:$0xf]
        %v348 = vld [vmem:[%s283 + $0x30] sm:$0xf]
        %v349 = vld [vmem:[%s283 + $0x34] sm:$0xf]
        %v350 = vld [vmem:[%s283 + $0x38] sm:$0xf]
        %v351 = vld [vmem:[%s283 + $0x3c] sm:$0xf]
        %v352 = vld [vmem:[#allocation5] sm:$0xf]
        %v353 = vld [vmem:[#allocation5 + $0x4] sm:$0xf]
        %v354 = vld [vmem:[#allocation5 + $0x8] sm:$0xf]
        %v355 = vld [vmem:[#allocation5 + $0xc] sm:$0xf]
        %v356 = vld [vmem:[#allocation5 + $0x10] sm:$0xf]
        %v357 = vld [vmem:[#allocation5 + $0x14] sm:$0xf]
        %v358 = vld [vmem:[#allocation5 + $0x18] sm:$0xf]
        %v359 = vld [vmem:[#allocation5 + $0x1c] sm:$0xf]
        %v360 = vld [vmem:[#allocation5 + $0x20] sm:$0xf]
        %v361 = vld [vmem:[#allocation5 + $0x24] sm:$0xf]
        %v362 = vld [vmem:[#allocation5 + $0x28] sm:$0xf]
        %v363 = vld [vmem:[#allocation5 + $0x2c] sm:$0xf]
        %v364 = vld [vmem:[#allocation5 + $0x30] sm:$0xf]
        %v365 = vld [vmem:[#allocation5 + $0x34] sm:$0xf]
        %v366 = vld [vmem:[#allocation5 + $0x38] sm:$0xf]
        %v367 = vld [vmem:[#allocation5 + $0x3c] sm:$0xf]
        %v368 = vlaneseq
        %v369 = vshrl.u32 %v368, 7
        %v370 = vsub.s32 0, %v369
        %v371 = vrot.slane %v331, %v370
        %v388 = vunpack.c.l.b16 %v336
        %v389 = vunpack.c.l.b16 %v337
        %v390 = vunpack.c.l.b16 %v338
        %v391 = vunpack.c.l.b16 %v339
        %v392 = vunpack.c.l.b16 %v340
        %v393 = vunpack.c.l.b16 %v341
        %v394 = vunpack.c.l.b16 %v342
        %v395 = vunpack.c.l.b16 %v343
        %v396 = vunpack.c.l.b16 %v344
        %v397 = vunpack.c.l.b16 %v345
        %v398 = vunpack.c.l.b16 %v346
        %v399 = vunpack.c.l.b16 %v347
        %v400 = vunpack.c.l.b16 %v348
        %v401 = vunpack.c.l.b16 %v349
        %v402 = vunpack.c.l.b16 %v350
        %v403 = vunpack.c.l.b16 %v351
        %v404 = vpack.c.b16 %v389, %v388
        %v405 = vpack.c.b16 %v391, %v390
        %v406 = vpack.c.b16 %v393, %v392
        %v407 = vpack.c.b16 %v395, %v394
        %v408 = vpack.c.b16 %v397, %v396
        %v409 = vpack.c.b16 %v399, %v398
        %v410 = vpack.c.b16 %v401, %v400
        %v411 = vpack.c.b16 %v403, %v402
        %v436 = vunpack.c.l.b16 %v352
        %v437 = vunpack.c.l.b16 %v353
        %v438 = vunpack.c.l.b16 %v354
        %v439 = vunpack.c.l.b16 %v355
        %v440 = vunpack.c.l.b16 %v356
        %v441 = vunpack.c.l.b16 %v357
        %v442 = vunpack.c.l.b16 %v358
        %v443 = vunpack.c.l.b16 %v359
        %v444 = vunpack.c.l.b16 %v360
        %v445 = vunpack.c.l.b16 %v361
        %v446 = vunpack.c.l.b16 %v362
        %v447 = vunpack.c.l.b16 %v363
        %v448 = vunpack.c.l.b16 %v364
        %v449 = vunpack.c.l.b16 %v365
        %v450 = vunpack.c.l.b16 %v366
        %v451 = vunpack.c.l.b16 %v367
        %v452 = vpack.c.b16 %v437, %v436
        %v453 = vpack.c.b16 %v439, %v438
        %v454 = vpack.c.b16 %v441, %v440
        %v455 = vpack.c.b16 %v443, %v442
        %v456 = vpack.c.b16 %v445, %v444
        %v457 = vpack.c.b16 %v447, %v446
        %v458 = vpack.c.b16 %v449, %v448
        %v459 = vpack.c.b16 %v451, %v450
        %468 = vmatprep.subr.bf16.mxu0 0
        %469 = vmatpush1.bf16.msra.mxu0 %v452
        %470 = vmatprep.subr.bf16.mxu0 0
        %471 = vmatpush1.bf16.msra.mxu0 %v453
        %472 = vmatprep.subr.bf16.mxu0 0
        %473 = vmatpush1.bf16.msra.mxu0 %v454
        %474 = vmatprep.subr.bf16.mxu0 0
        %475 = vmatpush1.bf16.msra.mxu0 %v455
        %476 = vmatprep.subr.bf16.mxu0 0
        %477 = vmatpush1.bf16.msra.mxu0 %v456
        %478 = vmatprep.subr.bf16.mxu0 0
        %479 = vmatpush1.bf16.msra.mxu0 %v457
        %480 = vmatprep.subr.bf16.mxu0 0
        %481 = vmatpush1.bf16.msra.mxu0 %v458
        %482 = vmatprep.subr.bf16.mxu0 0
        %483 = vmatpush1.bf16.msra.mxu0 %v459
        %484 = vmatprep.subr.bf16.mxu0 0
        %485 = vmatpush1.bf16.msra.mxu0 0
        %486 = vmatprep.subr.bf16.mxu0 0
        %487 = vmatpush1.bf16.msra.mxu0 0
        %488 = vmatprep.subr.bf16.mxu0 0
        %489 = vmatpush1.bf16.msra.mxu0 0
        %490 = vmatprep.subr.bf16.mxu0 0
        %491 = vmatpush1.bf16.msra.mxu0 0
        %492 = vmatprep.subr.bf16.mxu0 0
        %493 = vmatpush1.bf16.msra.mxu0 0
        %494 = vmatprep.subr.bf16.mxu0 0
        %495 = vmatpush1.bf16.msra.mxu0 0
        %496 = vmatprep.subr.bf16.mxu0 0
        %497 = vmatpush1.bf16.msra.mxu0 0
        %498 = vmatprep.subr.bf16.mxu0 0
        %499 = vmatpush1.bf16.msra.mxu0 0
        %500 = vmatprep.mubr.bf16.mxu0 0
        %501 = vmatmul.mubr.bf16.gmra.mrb[0].mxu0 %v404
        %v502 = vpop.f32.mrb[0].mxu0
        %v503 = vadd.f32 %v371, %v502
        %v504 = vpop.f32.mrb[0].mxu0
        %v505 = vpop.f32.mrb[0].mxu0
        %v506 = vadd.f32 %v371, %v505
        %v507 = vpop.f32.mrb[0].mxu0
        %508 = vmatprep.mubr.bf16.mxu0 0
        %509 = vmatmul.mubr.bf16.gmra.mrb[0].mxu0 %v405
        %v510 = vpop.f32.mrb[0].mxu0
        %v511 = vadd.f32 %v371, %v510
        %v512 = vpop.f32.mrb[0].mxu0
        %v513 = vpop.f32.mrb[0].mxu0
        %v514 = vadd.f32 %v371, %v513
        %v515 = vpop.f32.mrb[0].mxu0
        %516 = vmatprep.mubr.bf16.mxu0 0
        %517 = vmatmul.mubr.bf16.gmra.mrb[0].mxu0 %v406
        %v518 = vpop.f32.mrb[0].mxu0
        %v519 = vadd.f32 %v371, %v518
        %v520 = vpop.f32.mrb[0].mxu0
        %v521 = vpop.f32.mrb[0].mxu0
        %v522 = vadd.f32 %v371, %v521
        %v523 = vpop.f32.mrb[0].mxu0
        %524 = vmatprep.mubr.bf16.mxu0 0
        %525 = vmatmul.mubr.bf16.gmra.mrb[0].mxu0 %v407
        %v526 = vpop.f32.mrb[0].mxu0
        %v527 = vadd.f32 %v371, %v526
        %v528 = vpop.f32.mrb[0].mxu0
        %v529 = vpop.f32.mrb[0].mxu0
        %v530 = vadd.f32 %v371, %v529
        %v531 = vpop.f32.mrb[0].mxu0
        %532 = vmatprep.mubr.bf16.mxu0 0
        %533 = vmatmul.mubr.bf16.gmra.mrb[0].mxu0 %v408
        %v534 = vpop.f32.mrb[0].mxu0
        %v535 = vadd.f32 %v371, %v534
        %v536 = vpop.f32.mrb[0].mxu0
        %v537 = vpop.f32.mrb[0].mxu0
        %v538 = vadd.f32 %v371, %v537
        %v539 = vpop.f32.mrb[0].mxu0
        %540 = vmatprep.mubr.bf16.mxu0 0
        %541 = vmatmul.mubr.bf16.gmra.mrb[0].mxu0 %v409
        %v542 = vpop.f32.mrb[0].mxu0
        %v543 = vadd.f32 %v371, %v542
        %v544 = vpop.f32.mrb[0].mxu0
        %v545 = vpop.f32.mrb[0].mxu0
        %v546 = vadd.f32 %v371, %v545
        %v547 = vpop.f32.mrb[0].mxu0
        %548 = vmatprep.mubr.bf16.mxu0 0
        %549 = vmatmul.mubr.bf16.gmra.mrb[0].mxu0 %v410
        %v550 = vpop.f32.mrb[0].mxu0
        %v551 = vadd.f32 %v371, %v550
        %v552 = vpop.f32.mrb[0].mxu0
        %v553 = vpop.f32.mrb[0].mxu0
        %v554 = vadd.f32 %v371, %v553
        %v555 = vpop.f32.mrb[0].mxu0
        %556 = vmatprep.mubr.bf16.mxu0 0
        %557 = vmatmul.mubr.bf16.gmra.mrb[0].mxu0 %v411
        %v558 = vpop.f32.mrb[0].mxu0
        %v559 = vadd.f32 %v371, %v558
        %v560 = vpop.f32.mrb[0].mxu0
        %v561 = vpop.f32.mrb[0].mxu0
        %v562 = vadd.f32 %v371, %v561
        %v563 = vpop.f32.mrb[0].mxu0
        %564 = vdwg.mxu0
        %v565 = vmax.f32 %v503, 0.0
        %v566 = vmax.f32 %v506, 0.0
        %v567 = vmax.f32 %v511, 0.0
        %v568 = vmax.f32 %v514, 0.0
        %v569 = vmax.f32 %v519, 0.0
        %v570 = vmax.f32 %v522, 0.0
        %v571 = vmax.f32 %v527, 0.0
        %v572 = vmax.f32 %v530, 0.0
        %v573 = vmax.f32 %v535, 0.0
        %v574 = vmax.f32 %v538, 0.0
        %v575 = vmax.f32 %v543, 0.0
        %v576 = vmax.f32 %v546, 0.0
        %v577 = vmax.f32 %v551, 0.0
        %v578 = vmax.f32 %v554, 0.0
        %v579 = vmax.f32 %v559, 0.0
        %v580 = vmax.f32 %v562, 0.0
        %v581 = vpack.c.bf16 %v566, %v565
        %v582 = vpack.c.bf16 %v568, %v567
        %v583 = vpack.c.bf16 %v570, %v569
        %v584 = vpack.c.bf16 %v572, %v571
        %v585 = vpack.c.bf16 %v574, %v573
        %v586 = vpack.c.bf16 %v576, %v575
        %v587 = vpack.c.bf16 %v578, %v577
        %v588 = vpack.c.bf16 %v580, %v579
        %v589 = vld [vmem:[#allocation7] sm:$0xf]
        %v590 = vld [vmem:[#allocation7 + $0x4] sm:$0xf]
        %v591 = vld [vmem:[#allocation7 + $0x8] sm:$0xf]
        %v592 = vld [vmem:[#allocation7 + $0xc] sm:$0xf]
        %v593 = vld [vmem:[#allocation7 + $0x10] sm:$0xf]
        %v594 = vld [vmem:[#allocation7 + $0x14] sm:$0xf]
        %v595 = vld [vmem:[#allocation7 + $0x18] sm:$0xf]
        %v596 = vld [vmem:[#allocation7 + $0x1c] sm:$0xf]
        %v597 = vld [vmem:[#allocation7 + $0x20] sm:$0xf]
        %v598 = vld [vmem:[#allocation7 + $0x24] sm:$0xf]
        %v599 = vld [vmem:[#allocation7 + $0x28] sm:$0xf]
        %v600 = vld [vmem:[#allocation7 + $0x2c] sm:$0xf]
        %v601 = vld [vmem:[#allocation7 + $0x30] sm:$0xf]
        %v602 = vld [vmem:[#allocation7 + $0x34] sm:$0xf]
        %v603 = vld [vmem:[#allocation7 + $0x38] sm:$0xf]
        %v604 = vld [vmem:[#allocation7 + $0x3c] sm:$0xf]
        %v605 = vlaneseq
        %v606 = vshrl.u32 %v605, 7
        %v607 = vsub.s32 0, %v606
        %v608 = vrot.slane %v332, %v607
        %v625 = vunpack.c.l.b16 %v589
        %v626 = vunpack.c.l.b16 %v590
        %v627 = vunpack.c.l.b16 %v591
        %v628 = vunpack.c.l.b16 %v592
        %v629 = vunpack.c.l.b16 %v593
        %v630 = vunpack.c.l.b16 %v594
        %v631 = vunpack.c.l.b16 %v595
        %v632 = vunpack.c.l.b16 %v596
        %v633 = vunpack.c.l.b16 %v597
        %v634 = vunpack.c.l.b16 %v598
        %v635 = vunpack.c.l.b16 %v599
        %v636 = vunpack.c.l.b16 %v600
        %v637 = vunpack.c.l.b16 %v601
        %v638 = vunpack.c.l.b16 %v602
        %v639 = vunpack.c.l.b16 %v603
        %v640 = vunpack.c.l.b16 %v604
        %v641 = vpack.c.b16 %v626, %v625
        %v642 = vpack.c.b16 %v628, %v627
        %v643 = vpack.c.b16 %v630, %v629
        %v644 = vpack.c.b16 %v632, %v631
        %v645 = vpack.c.b16 %v634, %v633
        %v646 = vpack.c.b16 %v636, %v635
        %v647 = vpack.c.b16 %v638, %v637
        %v648 = vpack.c.b16 %v640, %v639
        %657 = vmatprep.subr.bf16.mxu0 0
        %658 = vmatpush1.bf16.msra.mxu0 %v641
        %659 = vmatprep.subr.bf16.mxu0 0
        %660 = vmatpush1.bf16.msra.mxu0 %v642
        %661 = vmatprep.subr.bf16.mxu0 0
        %662 = vmatpush1.bf16.msra.mxu0 %v643
        %663 = vmatprep.subr.bf16.mxu0 0
        %664 = vmatpush1.bf16.msra.mxu0 %v644
        %665 = vmatprep.subr.bf16.mxu0 0
        %666 = vmatpush1.bf16.msra.mxu0 %v645
        %667 = vmatprep.subr.bf16.mxu0 0
        %668 = vmatpush1.bf16.msra.mxu0 %v646
        %669 = vmatprep.subr.bf16.mxu0 0
        %670 = vmatpush1.bf16.msra.mxu0 %v647
        %671 = vmatprep.subr.bf16.mxu0 0
        %672 = vmatpush1.bf16.msra.mxu0 %v648
        %673 = vmatprep.subr.bf16.mxu0 0
        %674 = vmatpush1.bf16.msra.mxu0 0
        %675 = vmatprep.subr.bf16.mxu0 0
        %676 = vmatpush1.bf16.msra.mxu0 0
        %677 = vmatprep.subr.bf16.mxu0 0
        %678 = vmatpush1.bf16.msra.mxu0 0
        %679 = vmatprep.subr.bf16.mxu0 0
        %680 = vmatpush1.bf16.msra.mxu0 0
        %681 = vmatprep.subr.bf16.mxu0 0
        %682 = vmatpush1.bf16.msra.mxu0 0
        %683 = vmatprep.subr.bf16.mxu0 0
        %684 = vmatpush1.bf16.msra.mxu0 0
        %685 = vmatprep.subr.bf16.mxu0 0
        %686 = vmatpush1.bf16.msra.mxu0 0
        %687 = vmatprep.subr.bf16.mxu0 0
        %688 = vmatpush1.bf16.msra.mxu0 0
        %689 = vmatprep.mubr.bf16.mxu0 0
        %690 = vmatmul.mubr.bf16.gmra.mrb[0].mxu0 %v581
        %v691 = vpop.f32.mrb[0].mxu0
        %v692 = vadd.f32 %v608, %v691
        %v693 = vpop.f32.mrb[0].mxu0
        %v694 = vpop.f32.mrb[0].mxu0
        %v695 = vadd.f32 %v608, %v694
        %v696 = vpop.f32.mrb[0].mxu0
        %697 = vmatprep.mubr.bf16.mxu0 0
        %698 = vmatmul.mubr.bf16.gmra.mrb[0].mxu0 %v582
        %v699 = vpop.f32.mrb[0].mxu0
        %v700 = vadd.f32 %v608, %v699
        %v701 = vpop.f32.mrb[0].mxu0
        %v702 = vpop.f32.mrb[0].mxu0
        %v703 = vadd.f32 %v608, %v702
        %v704 = vpop.f32.mrb[0].mxu0
        %705 = vmatprep.mubr.bf16.mxu0 0
        %706 = vmatmul.mubr.bf16.gmra.mrb[0].mxu0 %v583
        %v707 = vpop.f32.mrb[0].mxu0
        %v708 = vadd.f32 %v608, %v707
        %v709 = vpop.f32.mrb[0].mxu0
        %v710 = vpop.f32.mrb[0].mxu0
        %v711 = vadd.f32 %v608, %v710
        %v712 = vpop.f32.mrb[0].mxu0
        %713 = vmatprep.mubr.bf16.mxu0 0
        %714 = vmatmul.mubr.bf16.gmra.mrb[0].mxu0 %v584
        %v715 = vpop.f32.mrb[0].mxu0
        %v716 = vadd.f32 %v608, %v715
        %v717 = vpop.f32.mrb[0].mxu0
        %v718 = vpop.f32.mrb[0].mxu0
        %v719 = vadd.f32 %v608, %v718
        %v720 = vpop.f32.mrb[0].mxu0
        %721 = vmatprep.mubr.bf16.mxu0 0
        %722 = vmatmul.mubr.bf16.gmra.mrb[0].mxu0 %v585
        %v723 = vpop.f32.mrb[0].mxu0
        %v724 = vadd.f32 %v608, %v723
        %v725 = vpop.f32.mrb[0].mxu0
        %v726 = vpop.f32.mrb[0].mxu0
        %v727 = vadd.f32 %v608, %v726
        %v728 = vpop.f32.mrb[0].mxu0
        %729 = vmatprep.mubr.bf16.mxu0 0
        %730 = vmatmul.mubr.bf16.gmra.mrb[0].mxu0 %v586
        %v731 = vpop.f32.mrb[0].mxu0
        %v732 = vadd.f32 %v608, %v731
        %v733 = vpop.f32.mrb[0].mxu0
        %v734 = vpop.f32.mrb[0].mxu0
        %v735 = vadd.f32 %v608, %v734
        %v736 = vpop.f32.mrb[0].mxu0
        %737 = vmatprep.mubr.bf16.mxu0 0
        %738 = vmatmul.mubr.bf16.gmra.mrb[0].mxu0 %v587
        %v739 = vpop.f32.mrb[0].mxu0
        %v740 = vadd.f32 %v608, %v739
        %v741 = vpop.f32.mrb[0].mxu0
        %v742 = vpop.f32.mrb[0].mxu0
        %v743 = vadd.f32 %v608, %v742
        %v744 = vpop.f32.mrb[0].mxu0
        %745 = vmatprep.mubr.bf16.mxu0 0
        %746 = vmatmul.mubr.bf16.gmra.mrb[0].mxu0 %v588
        %v747 = vpop.f32.mrb[0].mxu0
        %v748 = vadd.f32 %v608, %v747
        %v749 = vpop.f32.mrb[0].mxu0
        %v750 = vpop.f32.mrb[0].mxu0
        %v751 = vadd.f32 %v608, %v750
        %v752 = vpop.f32.mrb[0].mxu0
        %753 = vdwg.mxu0
        %v754 = vmax.f32 %v692, 0.0
        %v755 = vmax.f32 %v695, 0.0
        %v756 = vmax.f32 %v700, 0.0
        %v757 = vmax.f32 %v703, 0.0
        %v758 = vmax.f32 %v708, 0.0
        %v759 = vmax.f32 %v711, 0.0
        %v760 = vmax.f32 %v716, 0.0
        %v761 = vmax.f32 %v719, 0.0
        %v762 = vmax.f32 %v724, 0.0
        %v763 = vmax.f32 %v727, 0.0
        %v764 = vmax.f32 %v732, 0.0
        %v765 = vmax.f32 %v735, 0.0
        %v766 = vmax.f32 %v740, 0.0
        %v767 = vmax.f32 %v743, 0.0
        %v768 = vmax.f32 %v748, 0.0
        %v769 = vmax.f32 %v751, 0.0
        %v770 = vpack.c.bf16 %v755, %v754
        %v771 = vpack.c.bf16 %v757, %v756
        %v772 = vpack.c.bf16 %v759, %v758
        %v773 = vpack.c.bf16 %v761, %v760
        %v774 = vpack.c.bf16 %v763, %v762
        %v775 = vpack.c.bf16 %v765, %v764
        %v776 = vpack.c.bf16 %v767, %v766
        %v777 = vpack.c.bf16 %v769, %v768
        %v778 = vld [vmem:[#allocation8] sm:$0xf]
        %v779 = vld [vmem:[#allocation8 + $0x4] sm:$0xf]
        %v780 = vld [vmem:[#allocation8 + $0x8] sm:$0xf]
        %v781 = vld [vmem:[#allocation8 + $0xc] sm:$0xf]
        %v782 = vld [vmem:[#allocation8 + $0x10] sm:$0xf]
        %v783 = vld [vmem:[#allocation8 + $0x14] sm:$0xf]
        %v784 = vld [vmem:[#allocation8 + $0x18] sm:$0xf]
        %v785 = vld [vmem:[#allocation8 + $0x1c] sm:$0xf]
        %v786 = vld [vmem:[#allocation8 + $0x20] sm:$0xf]
        %v787 = vld [vmem:[#allocation8 + $0x24] sm:$0xf]
        %v788 = vld [vmem:[#allocation8 + $0x28] sm:$0xf]
        %v789 = vld [vmem:[#allocation8 + $0x2c] sm:$0xf]
        %v790 = vld [vmem:[#allocation8 + $0x30] sm:$0xf]
        %v791 = vld [vmem:[#allocation8 + $0x34] sm:$0xf]
        %v792 = vld [vmem:[#allocation8 + $0x38] sm:$0xf]
        %v793 = vld [vmem:[#allocation8 + $0x3c] sm:$0xf]
        %v794 = vlaneseq
        %v795 = vshrl.u32 %v794, 7
        %v796 = vsub.s32 0, %v795
        %v797 = vrot.slane %v333, %v796
        %v814 = vunpack.c.l.b16 %v778
        %v815 = vunpack.c.l.b16 %v779
        %v816 = vunpack.c.l.b16 %v780
        %v817 = vunpack.c.l.b16 %v781
        %v818 = vunpack.c.l.b16 %v782
        %v819 = vunpack.c.l.b16 %v783
        %v820 = vunpack.c.l.b16 %v784
        %v821 = vunpack.c.l.b16 %v785
        %v822 = vunpack.c.l.b16 %v786
        %v823 = vunpack.c.l.b16 %v787
        %v824 = vunpack.c.l.b16 %v788
        %v825 = vunpack.c.l.b16 %v789
        %v826 = vunpack.c.l.b16 %v790
        %v827 = vunpack.c.l.b16 %v791
        %v828 = vunpack.c.l.b16 %v792
        %v829 = vunpack.c.l.b16 %v793
        %v830 = vpack.c.b16 %v815, %v814
        %v831 = vpack.c.b16 %v817, %v816
        %v832 = vpack.c.b16 %v819, %v818
        %v833 = vpack.c.b16 %v821, %v820
        %v834 = vpack.c.b16 %v823, %v822
        %v835 = vpack.c.b16 %v825, %v824
        %v836 = vpack.c.b16 %v827, %v826
        %v837 = vpack.c.b16 %v829, %v828
        %846 = vmatprep.subr.bf16.mxu0 0
        %847 = vmatpush1.bf16.msra.mxu0 %v830
        %848 = vmatprep.subr.bf16.mxu0 0
        %849 = vmatpush1.bf16.msra.mxu0 %v831
        %850 = vmatprep.subr.bf16.mxu0 0
        %851 = vmatpush1.bf16.msra.mxu0 %v832
        %852 = vmatprep.subr.bf16.mxu0 0
        %853 = vmatpush1.bf16.msra.mxu0 %v833
        %854 = vmatprep.subr.bf16.mxu0 0
        %855 = vmatpush1.bf16.msra.mxu0 %v834
        %856 = vmatprep.subr.bf16.mxu0 0
        %857 = vmatpush1.bf16.msra.mxu0 %v835
        %858 = vmatprep.subr.bf16.mxu0 0
        %859 = vmatpush1.bf16.msra.mxu0 %v836
        %860 = vmatprep.subr.bf16.mxu0 0
        %861 = vmatpush1.bf16.msra.mxu0 %v837
        %862 = vmatprep.subr.bf16.mxu0 0
        %863 = vmatpush1.bf16.msra.mxu0 0
        %864 = vmatprep.subr.bf16.mxu0 0
        %865 = vmatpush1.bf16.msra.mxu0 0
        %866 = vmatprep.subr.bf16.mxu0 0
        %867 = vmatpush1.bf16.msra.mxu0 0
        %868 = vmatprep.subr.bf16.mxu0 0
        %869 = vmatpush1.bf16.msra.mxu0 0
        %870 = vmatprep.subr.bf16.mxu0 0
        %871 = vmatpush1.bf16.msra.mxu0 0
        %872 = vmatprep.subr.bf16.mxu0 0
        %873 = vmatpush1.bf16.msra.mxu0 0
        %874 = vmatprep.subr.bf16.mxu0 0
        %875 = vmatpush1.bf16.msra.mxu0 0
        %876 = vmatprep.subr.bf16.mxu0 0
        %877 = vmatpush1.bf16.msra.mxu0 0
        %878 = vmatprep.mubr.bf16.mxu0 0
        %879 = vmatmul.mubr.bf16.gmra.mrb[0].mxu0 %v770
        %v880 = vpop.f32.mrb[0].mxu0
        %v881 = vadd.f32 %v797, %v880
        %v882 = vpop.f32.mrb[0].mxu0
        %v883 = vpop.f32.mrb[0].mxu0
        %v884 = vadd.f32 %v797, %v883
        %v885 = vpop.f32.mrb[0].mxu0
        %886 = vmatprep.mubr.bf16.mxu0 0
        %887 = vmatmul.mubr.bf16.gmra.mrb[0].mxu0 %v771
        %v888 = vpop.f32.mrb[0].mxu0
        %v889 = vadd.f32 %v797, %v888
        %v890 = vpop.f32.mrb[0].mxu0
        %v891 = vpop.f32.mrb[0].mxu0
        %v892 = vadd.f32 %v797, %v891
        %v893 = vpop.f32.mrb[0].mxu0
        %894 = vmatprep.mubr.bf16.mxu0 0
        %895 = vmatmul.mubr.bf16.gmra.mrb[0].mxu0 %v772
        %v896 = vpop.f32.mrb[0].mxu0
        %v897 = vadd.f32 %v797, %v896
        %v898 = vpop.f32.mrb[0].mxu0
        %v899 = vpop.f32.mrb[0].mxu0
        %v900 = vadd.f32 %v797, %v899
        %v901 = vpop.f32.mrb[0].mxu0
        %902 = vmatprep.mubr.bf16.mxu0 0
        %903 = vmatmul.mubr.bf16.gmra.mrb[0].mxu0 %v773
        %v904 = vpop.f32.mrb[0].mxu0
        %v905 = vadd.f32 %v797, %v904
        %v906 = vpop.f32.mrb[0].mxu0
        %v907 = vpop.f32.mrb[0].mxu0
        %v908 = vadd.f32 %v797, %v907
        %v909 = vpop.f32.mrb[0].mxu0
        %910 = vmatprep.mubr.bf16.mxu0 0
        %911 = vmatmul.mubr.bf16.gmra.mrb[0].mxu0 %v774
        %v912 = vpop.f32.mrb[0].mxu0
        %v913 = vadd.f32 %v797, %v912
        %v914 = vpop.f32.mrb[0].mxu0
        %v915 = vpop.f32.mrb[0].mxu0
        %v916 = vadd.f32 %v797, %v915
        %v917 = vpop.f32.mrb[0].mxu0
        %918 = vmatprep.mubr.bf16.mxu0 0
        %919 = vmatmul.mubr.bf16.gmra.mrb[0].mxu0 %v775
        %v920 = vpop.f32.mrb[0].mxu0
        %v921 = vadd.f32 %v797, %v920
        %v922 = vpop.f32.mrb[0].mxu0
        %v923 = vpop.f32.mrb[0].mxu0
        %v924 = vadd.f32 %v797, %v923
        %v925 = vpop.f32.mrb[0].mxu0
        %926 = vmatprep.mubr.bf16.mxu0 0
        %927 = vmatmul.mubr.bf16.gmra.mrb[0].mxu0 %v776
        %v928 = vpop.f32.mrb[0].mxu0
        %v929 = vadd.f32 %v797, %v928
        %v930 = vpop.f32.mrb[0].mxu0
        %v931 = vpop.f32.mrb[0].mxu0
        %v932 = vadd.f32 %v797, %v931
        %v933 = vpop.f32.mrb[0].mxu0
        %934 = vmatprep.mubr.bf16.mxu0 0
        %935 = vmatmul.mubr.bf16.gmra.mrb[0].mxu0 %v777
        %v936 = vpop.f32.mrb[0].mxu0
        %v937 = vadd.f32 %v797, %v936
        %v938 = vpop.f32.mrb[0].mxu0
        %v939 = vpop.f32.mrb[0].mxu0
        %v940 = vadd.f32 %v797, %v939
        %v941 = vpop.f32.mrb[0].mxu0
        %942 = vdwg.mxu0
        %v943 = vmax.f32 %v881, 0.0
        %v944 = vmax.f32 %v884, 0.0
        %v945 = vmax.f32 %v889, 0.0
        %v946 = vmax.f32 %v892, 0.0
        %v947 = vmax.f32 %v897, 0.0
        %v948 = vmax.f32 %v900, 0.0
        %v949 = vmax.f32 %v905, 0.0
        %v950 = vmax.f32 %v908, 0.0
        %v951 = vmax.f32 %v913, 0.0
        %v952 = vmax.f32 %v916, 0.0
        %v953 = vmax.f32 %v921, 0.0
        %v954 = vmax.f32 %v924, 0.0
        %v955 = vmax.f32 %v929, 0.0
        %v956 = vmax.f32 %v932, 0.0
        %v957 = vmax.f32 %v937, 0.0
        %v958 = vmax.f32 %v940, 0.0
        %v959 = vpack.c.bf16 %v944, %v943
        %v960 = vpack.c.bf16 %v946, %v945
        %v961 = vpack.c.bf16 %v948, %v947
        %v962 = vpack.c.bf16 %v950, %v949
        %v963 = vpack.c.bf16 %v952, %v951
        %v964 = vpack.c.bf16 %v954, %v953
        %v965 = vpack.c.bf16 %v956, %v955
        %v966 = vpack.c.bf16 %v958, %v957
        %v967 = vld [vmem:[#allocation10] sm:$0xf]
        %v968 = vld [vmem:[#allocation10 + $0x4] sm:$0xf]
        %v969 = vld [vmem:[#allocation10 + $0x8] sm:$0xf]
        %v970 = vld [vmem:[#allocation10 + $0xc] sm:$0xf]
        %v971 = vld [vmem:[#allocation10 + $0x10] sm:$0xf]
        %v972 = vld [vmem:[#allocation10 + $0x14] sm:$0xf]
        %v973 = vld [vmem:[#allocation10 + $0x18] sm:$0xf]
        %v974 = vld [vmem:[#allocation10 + $0x1c] sm:$0xf]
        %v975 = vld [vmem:[#allocation10 + $0x20] sm:$0xf]
        %v976 = vld [vmem:[#allocation10 + $0x24] sm:$0xf]
        %v977 = vld [vmem:[#allocation10 + $0x28] sm:$0xf]
        %v978 = vld [vmem:[#allocation10 + $0x2c] sm:$0xf]
        %v979 = vld [vmem:[#allocation10 + $0x30] sm:$0xf]
        %v980 = vld [vmem:[#allocation10 + $0x34] sm:$0xf]
        %v981 = vld [vmem:[#allocation10 + $0x38] sm:$0xf]
        %v982 = vld [vmem:[#allocation10 + $0x3c] sm:$0xf]
        %v983 = vlaneseq
        %v984 = vshrl.u32 %v983, 7
        %v985 = vsub.s32 0, %v984
        %v986 = vrot.slane %v334, %v985
        %v1003 = vunpack.c.l.b16 %v967
        %v1004 = vunpack.c.l.b16 %v968
        %v1005 = vunpack.c.l.b16 %v969
        %v1006 = vunpack.c.l.b16 %v970
        %v1007 = vunpack.c.l.b16 %v971
        %v1008 = vunpack.c.l.b16 %v972
        %v1009 = vunpack.c.l.b16 %v973
        %v1010 = vunpack.c.l.b16 %v974
        %v1011 = vunpack.c.l.b16 %v975
        %v1012 = vunpack.c.l.b16 %v976
        %v1013 = vunpack.c.l.b16 %v977
        %v1014 = vunpack.c.l.b16 %v978
        %v1015 = vunpack.c.l.b16 %v979
        %v1016 = vunpack.c.l.b16 %v980
        %v1017 = vunpack.c.l.b16 %v981
        %v1018 = vunpack.c.l.b16 %v982
        %v1019 = vpack.c.b16 %v1004, %v1003
        %v1020 = vpack.c.b16 %v1006, %v1005
        %v1021 = vpack.c.b16 %v1008, %v1007
        %v1022 = vpack.c.b16 %v1010, %v1009
        %v1023 = vpack.c.b16 %v1012, %v1011
        %v1024 = vpack.c.b16 %v1014, %v1013
        %v1025 = vpack.c.b16 %v1016, %v1015
        %v1026 = vpack.c.b16 %v1018, %v1017
        %1035 = vmatprep.subr.bf16.mxu0 0
        %1036 = vmatpush1.bf16.msra.mxu0 %v1019
        %1037 = vmatprep.subr.bf16.mxu0 0
        %1038 = vmatpush1.bf16.msra.mxu0 %v1020
        %1039 = vmatprep.subr.bf16.mxu0 0
        %1040 = vmatpush1.bf16.msra.mxu0 %v1021
        %1041 = vmatprep.subr.bf16.mxu0 0
        %1042 = vmatpush1.bf16.msra.mxu0 %v1022
        %1043 = vmatprep.subr.bf16.mxu0 0
        %1044 = vmatpush1.bf16.msra.mxu0 %v1023
        %1045 = vmatprep.subr.bf16.mxu0 0
        %1046 = vmatpush1.bf16.msra.mxu0 %v1024
        %1047 = vmatprep.subr.bf16.mxu0 0
        %1048 = vmatpush1.bf16.msra.mxu0 %v1025
        %1049 = vmatprep.subr.bf16.mxu0 0
        %1050 = vmatpush1.bf16.msra.mxu0 %v1026
        %1051 = vmatprep.subr.bf16.mxu0 0
        %1052 = vmatpush1.bf16.msra.mxu0 0
        %1053 = vmatprep.subr.bf16.mxu0 0
        %1054 = vmatpush1.bf16.msra.mxu0 0
        %1055 = vmatprep.subr.bf16.mxu0 0
        %1056 = vmatpush1.bf16.msra.mxu0 0
        %1057 = vmatprep.subr.bf16.mxu0 0
        %1058 = vmatpush1.bf16.msra.mxu0 0
        %1059 = vmatprep.subr.bf16.mxu0 0
        %1060 = vmatpush1.bf16.msra.mxu0 0
        %1061 = vmatprep.subr.bf16.mxu0 0
        %1062 = vmatpush1.bf16.msra.mxu0 0
        %1063 = vmatprep.subr.bf16.mxu0 0
        %1064 = vmatpush1.bf16.msra.mxu0 0
        %1065 = vmatprep.subr.bf16.mxu0 0
        %1066 = vmatpush1.bf16.msra.mxu0 0
        %1067 = vmatprep.mubr.bf16.mxu0 0
        %1068 = vmatmul.mubr.bf16.gmra.mrb[0].mxu0 %v959
        %v1069 = vpop.f32.mrb[0].mxu0
        %v1070 = vadd.f32 %v986, %v1069
        %v1071 = vpop.f32.mrb[0].mxu0
        %v1072 = vpop.f32.mrb[0].mxu0
        %v1073 = vadd.f32 %v986, %v1072
        %v1074 = vpop.f32.mrb[0].mxu0
        %1075 = vmatprep.mubr.bf16.mxu0 0
        %1076 = vmatmul.mubr.bf16.gmra.mrb[0].mxu0 %v960
        %v1077 = vpop.f32.mrb[0].mxu0
        %v1078 = vadd.f32 %v986, %v1077
        %v1079 = vpop.f32.mrb[0].mxu0
        %v1080 = vpop.f32.mrb[0].mxu0
        %v1081 = vadd.f32 %v986, %v1080
        %v1082 = vpop.f32.mrb[0].mxu0
        %1083 = vmatprep.mubr.bf16.mxu0 0
        %1084 = vmatmul.mubr.bf16.gmra.mrb[0].mxu0 %v961
        %v1085 = vpop.f32.mrb[0].mxu0
        %v1086 = vadd.f32 %v986, %v1085
        %v1087 = vpop.f32.mrb[0].mxu0
        %v1088 = vpop.f32.mrb[0].mxu0
        %v1089 = vadd.f32 %v986, %v1088
        %v1090 = vpop.f32.mrb[0].mxu0
        %1091 = vmatprep.mubr.bf16.mxu0 0
        %1092 = vmatmul.mubr.bf16.gmra.mrb[0].mxu0 %v962
        %v1093 = vpop.f32.mrb[0].mxu0
        %v1094 = vadd.f32 %v986, %v1093
        %v1095 = vpop.f32.mrb[0].mxu0
        %v1096 = vpop.f32.mrb[0].mxu0
        %v1097 = vadd.f32 %v986, %v1096
        %v1098 = vpop.f32.mrb[0].mxu0
        %1099 = vmatprep.mubr.bf16.mxu0 0
        %1100 = vmatmul.mubr.bf16.gmra.mrb[0].mxu0 %v963
        %v1101 = vpop.f32.mrb[0].mxu0
        %v1102 = vadd.f32 %v986, %v1101
        %v1103 = vpop.f32.mrb[0].mxu0
        %v1104 = vpop.f32.mrb[0].mxu0
        %v1105 = vadd.f32 %v986, %v1104
        %v1106 = vpop.f32.mrb[0].mxu0
        %1107 = vmatprep.mubr.bf16.mxu0 0
        %1108 = vmatmul.mubr.bf16.gmra.mrb[0].mxu0 %v964
        %v1109 = vpop.f32.mrb[0].mxu0
        %v1110 = vadd.f32 %v986, %v1109
        %v1111 = vpop.f32.mrb[0].mxu0
        %v1112 = vpop.f32.mrb[0].mxu0
        %v1113 = vadd.f32 %v986, %v1112
        %v1114 = vpop.f32.mrb[0].mxu0
        %1115 = vmatprep.mubr.bf16.mxu0 0
        %1116 = vmatmul.mubr.bf16.gmra.mrb[0].mxu0 %v965
        %v1117 = vpop.f32.mrb[0].mxu0
        %v1118 = vadd.f32 %v986, %v1117
        %v1119 = vpop.f32.mrb[0].mxu0
        %v1120 = vpop.f32.mrb[0].mxu0
        %v1121 = vadd.f32 %v986, %v1120
        %v1122 = vpop.f32.mrb[0].mxu0
        %1123 = vmatprep.mubr.bf16.mxu0 0
        %1124 = vmatmul.mubr.bf16.gmra.mrb[0].mxu0 %v966
        %v1125 = vpop.f32.mrb[0].mxu0
        %v1126 = vadd.f32 %v986, %v1125
        %v1127 = vpop.f32.mrb[0].mxu0
        %v1128 = vpop.f32.mrb[0].mxu0
        %v1129 = vadd.f32 %v986, %v1128
        %v1130 = vpop.f32.mrb[0].mxu0
        %1131 = vdwg.mxu0
        %v1132 = vmax.f32 %v1070, 0.0
        %v1133 = vmax.f32 %v1073, 0.0
        %v1134 = vmax.f32 %v1078, 0.0
        %v1135 = vmax.f32 %v1081, 0.0
        %v1136 = vmax.f32 %v1086, 0.0
        %v1137 = vmax.f32 %v1089, 0.0
        %v1138 = vmax.f32 %v1094, 0.0
        %v1139 = vmax.f32 %v1097, 0.0
        %v1140 = vmax.f32 %v1102, 0.0
        %v1141 = vmax.f32 %v1105, 0.0
        %v1142 = vmax.f32 %v1110, 0.0
        %v1143 = vmax.f32 %v1113, 0.0
        %v1144 = vmax.f32 %v1118, 0.0
        %v1145 = vmax.f32 %v1121, 0.0
        %v1146 = vmax.f32 %v1126, 0.0
        %v1147 = vmax.f32 %v1129, 0.0
        %v1148 = vlaneseq
        %v1149 = vshrl.u32 %v1148, 7
        %v1150 = vsub.s32 0, %v1149
        %v1151 = vrot.slane %v335, %v1150
        %v1152 = vadd.f32 %v1132, %v1151
        %v1153 = vadd.f32 %v1133, %v1151
        %v1154 = vadd.f32 %v1134, %v1151
        %v1155 = vadd.f32 %v1135, %v1151
        %v1156 = vadd.f32 %v1136, %v1151
        %v1157 = vadd.f32 %v1137, %v1151
        %v1158 = vadd.f32 %v1138, %v1151
        %v1159 = vadd.f32 %v1139, %v1151
        %v1160 = vadd.f32 %v1140, %v1151
        %v1161 = vadd.f32 %v1141, %v1151
        %v1162 = vadd.f32 %v1142, %v1151
        %v1163 = vadd.f32 %v1143, %v1151
        %v1164 = vadd.f32 %v1144, %v1151
        %v1165 = vadd.f32 %v1145, %v1151
        %v1166 = vadd.f32 %v1146, %v1151
        %v1167 = vadd.f32 %v1147, %v1151
        %1168 = vmax.xlane.f32.xlu0 %v1152
        %v1169 = vpop.xlane.xlu0 %1168
        %1170 = vmax.xlane.f32.xlu0 %v1153
        %v1171 = vpop.xlane.xlu0 %1170
        %1172 = vmax.xlane.f32.xlu0 %v1154
        %v1173 = vpop.xlane.xlu0 %1172
        %1174 = vmax.xlane.f32.xlu0 %v1155
        %v1175 = vpop.xlane.xlu0 %1174
        %1176 = vmax.xlane.f32.xlu0 %v1156
        %v1177 = vpop.xlane.xlu0 %1176
        %1178 = vmax.xlane.f32.xlu0 %v1157
        %v1179 = vpop.xlane.xlu0 %1178
        %1180 = vmax.xlane.f32.xlu0 %v1158
        %v1181 = vpop.xlane.xlu0 %1180
        %1182 = vmax.xlane.f32.xlu0 %v1159
        %v1183 = vpop.xlane.xlu0 %1182
        %1184 = vmax.xlane.f32.xlu0 %v1160
        %v1185 = vpop.xlane.xlu0 %1184
        %1186 = vmax.xlane.f32.xlu0 %v1161
        %v1187 = vpop.xlane.xlu0 %1186
        %1188 = vmax.xlane.f32.xlu0 %v1162
        %v1189 = vpop.xlane.xlu0 %1188
        %1190 = vmax.xlane.f32.xlu0 %v1163
        %v1191 = vpop.xlane.xlu0 %1190
        %1192 = vmax.xlane.f32.xlu0 %v1164
        %v1193 = vpop.xlane.xlu0 %1192
        %1194 = vmax.xlane.f32.xlu0 %v1165
        %v1195 = vpop.xlane.xlu0 %1194
        %1196 = vmax.xlane.f32.xlu0 %v1166
        %v1197 = vpop.xlane.xlu0 %1196
        %1198 = vmax.xlane.f32.xlu0 %v1167
        %v1199 = vpop.xlane.xlu0 %1198
        %v1200 = vsub.f32 %v1152, %v1169
        %v1201 = vsub.f32 %v1153, %v1171
        %v1202 = vsub.f32 %v1154, %v1173
        %v1203 = vsub.f32 %v1155, %v1175
        %v1204 = vsub.f32 %v1156, %v1177
        %v1205 = vsub.f32 %v1157, %v1179
        %v1206 = vsub.f32 %v1158, %v1181
        %v1207 = vsub.f32 %v1159, %v1183
        %v1208 = vsub.f32 %v1160, %v1185
        %v1209 = vsub.f32 %v1161, %v1187
        %v1210 = vsub.f32 %v1162, %v1189
        %v1211 = vsub.f32 %v1163, %v1191
        %v1212 = vsub.f32 %v1164, %v1193
        %v1213 = vsub.f32 %v1165, %v1195
        %v1214 = vsub.f32 %v1166, %v1197
        %v1215 = vsub.f32 %v1167, %v1199
        %v1216 = vmul.f32 %v1200, 1.442695
        %v1217 = vpow.pop %v1216
        %v1218 = vmul.f32 %v1201, 1.442695
        %v1219 = vpow.pop %v1218
        %v1220 = vmul.f32 %v1202, 1.442695
        %v1221 = vpow.pop %v1220
        %v1222 = vmul.f32 %v1203, 1.442695
        %v1223 = vpow.pop %v1222
        %v1224 = vmul.f32 %v1204, 1.442695
        %v1225 = vpow.pop %v1224
        %v1226 = vmul.f32 %v1205, 1.442695
        %v1227 = vpow.pop %v1226
        %v1228 = vmul.f32 %v1206, 1.442695
        %v1229 = vpow.pop %v1228
        %v1230 = vmul.f32 %v1207, 1.442695
        %v1231 = vpow.pop %v1230
        %v1232 = vmul.f32 %v1208, 1.442695
        %v1233 = vpow.pop %v1232
        %v1234 = vmul.f32 %v1209, 1.442695
        %v1235 = vpow.pop %v1234
        %v1236 = vmul.f32 %v1210, 1.442695
        %v1237 = vpow.pop %v1236
        %v1238 = vmul.f32 %v1211, 1.442695
        %v1239 = vpow.pop %v1238
        %v1240 = vmul.f32 %v1212, 1.442695
        %v1241 = vpow.pop %v1240
        %v1242 = vmul.f32 %v1213, 1.442695
        %v1243 = vpow.pop %v1242
        %v1244 = vmul.f32 %v1214, 1.442695
        %v1245 = vpow.pop %v1244
        %v1246 = vmul.f32 %v1215, 1.442695
        %v1247 = vpow.pop %v1246
        %1248 = vadd.xlane.f32.xlu0 %v1217
        %v1249 = vpop.xlane.xlu0 %1248
        %1250 = vadd.xlane.f32.xlu0 %v1219
        %v1251 = vpop.xlane.xlu0 %1250
        %1252 = vadd.xlane.f32.xlu0 %v1221
        %v1253 = vpop.xlane.xlu0 %1252
        %1254 = vadd.xlane.f32.xlu0 %v1223
        %v1255 = vpop.xlane.xlu0 %1254
        %1256 = vadd.xlane.f32.xlu0 %v1225
        %v1257 = vpop.xlane.xlu0 %1256
        %1258 = vadd.xlane.f32.xlu0 %v1227
        %v1259 = vpop.xlane.xlu0 %1258
        %1260 = vadd.xlane.f32.xlu0 %v1229
        %v1261 = vpop.xlane.xlu0 %1260
        %1262 = vadd.xlane.f32.xlu0 %v1231
        %v1263 = vpop.xlane.xlu0 %1262
        %1264 = vadd.xlane.f32.xlu0 %v1233
        %v1265 = vpop.xlane.xlu0 %1264
        %1266 = vadd.xlane.f32.xlu0 %v1235
        %v1267 = vpop.xlane.xlu0 %1266
        %1268 = vadd.xlane.f32.xlu0 %v1237
        %v1269 = vpop.xlane.xlu0 %1268
        %1270 = vadd.xlane.f32.xlu0 %v1239
        %v1271 = vpop.xlane.xlu0 %1270
        %1272 = vadd.xlane.f32.xlu0 %v1241
        %v1273 = vpop.xlane.xlu0 %1272
        %1274 = vadd.xlane.f32.xlu0 %v1243
        %v1275 = vpop.xlane.xlu0 %1274
        %1276 = vadd.xlane.f32.xlu0 %v1245
        %v1277 = vpop.xlane.xlu0 %1276
        %1278 = vadd.xlane.f32.xlu0 %v1247
        %v1279 = vpop.xlane.xlu0 %1278
        %v1280 = vlog2.pop %v1249
        %v1281 = vmul.f32 %v1280, 0.6931472
        %v1282 = vlog2.pop %v1251
        %v1283 = vmul.f32 %v1282, 0.6931472
        %v1284 = vlog2.pop %v1253
        %v1285 = vmul.f32 %v1284, 0.6931472
        %v1286 = vlog2.pop %v1255
        %v1287 = vmul.f32 %v1286, 0.6931472
        %v1288 = vlog2.pop %v1257
        %v1289 = vmul.f32 %v1288, 0.6931472
        %v1290 = vlog2.pop %v1259
        %v1291 = vmul.f32 %v1290, 0.6931472
        %v1292 = vlog2.pop %v1261
        %v1293 = vmul.f32 %v1292, 0.6931472
        %v1294 = vlog2.pop %v1263
        %v1295 = vmul.f32 %v1294, 0.6931472
        %v1296 = vlog2.pop %v1265
        %v1297 = vmul.f32 %v1296, 0.6931472
        %v1298 = vlog2.pop %v1267
        %v1299 = vmul.f32 %v1298, 0.6931472
        %v1300 = vlog2.pop %v1269
        %v1301 = vmul.f32 %v1300, 0.6931472
        %v1302 = vlog2.pop %v1271
        %v1303 = vmul.f32 %v1302, 0.6931472
        %v1304 = vlog2.pop %v1273
        %v1305 = vmul.f32 %v1304, 0.6931472
        %v1306 = vlog2.pop %v1275
        %v1307 = vmul.f32 %v1306, 0.6931472
        %v1308 = vlog2.pop %v1277
        %v1309 = vmul.f32 %v1308, 0.6931472
        %v1310 = vlog2.pop %v1279
        %v1311 = vmul.f32 %v1310, 0.6931472
        %v1312 = vsub.f32 %v1200, %v1281
        %v1313 = vsub.f32 %v1201, %v1283
        %v1314 = vsub.f32 %v1202, %v1285
        %v1315 = vsub.f32 %v1203, %v1287
        %v1316 = vsub.f32 %v1204, %v1289
        %v1317 = vsub.f32 %v1205, %v1291
        %v1318 = vsub.f32 %v1206, %v1293
        %v1319 = vsub.f32 %v1207, %v1295
        %v1320 = vsub.f32 %v1208, %v1297
        %v1321 = vsub.f32 %v1209, %v1299
        %v1322 = vsub.f32 %v1210, %v1301
        %v1323 = vsub.f32 %v1211, %v1303
        %v1324 = vsub.f32 %v1212, %v1305
        %v1325 = vsub.f32 %v1213, %v1307
        %v1326 = vsub.f32 %v1214, %v1309
        %v1327 = vsub.f32 %v1215, %v1311
        %1328 = vst [vmem:[%s327] sm:$0xff] %v1312
        %1329 = vst [vmem:[%s327 + $0x8] sm:$0xff] %v1313
        %1330 = vst [vmem:[%s327 + $0x10] sm:$0xff] %v1314
        %1331 = vst [vmem:[%s327 + $0x18] sm:$0xff] %v1315
        %1332 = vst [vmem:[%s327 + $0x20] sm:$0xff] %v1316
        %1333 = vst [vmem:[%s327 + $0x28] sm:$0xff] %v1317
        %1334 = vst [vmem:[%s327 + $0x30] sm:$0xff] %v1318
        %1335 = vst [vmem:[%s327 + $0x38] sm:$0xff] %v1319
        %1336 = vst [vmem:[%s327 + $0x40] sm:$0xff] %v1320
        %1337 = vst [vmem:[%s327 + $0x48] sm:$0xff] %v1321
        %1338 = vst [vmem:[%s327 + $0x50] sm:$0xff] %v1322
        %1339 = vst [vmem:[%s327 + $0x58] sm:$0xff] %v1323
        %1340 = vst [vmem:[%s327 + $0x60] sm:$0xff] %v1324
        %1341 = vst [vmem:[%s327 + $0x68] sm:$0xff] %v1325
        %1342 = vst [vmem:[%s327 + $0x70] sm:$0xff] %v1326
        %1343 = vst [vmem:[%s327 + $0x78] sm:$0xff] %v1327
        %s1344 = sand.u32 %s164, 1
        %s1345 = scalar_lea.sflag [#allocation4], %s1344
        %s1346 = sand.u32 %s164, 1
        %s1347 = smul.addr %s1346, 128
        %s1348 = scalar_lea.vmem [#allocation11], %s1347
        // Predicated region
        $region65: #{tpu_custom_call.1} parent=43 // pred_check
          %p1349 = pneg %p174
        $region66: #{tpu_custom_call.1} parent=43 // pred_check_branch
          %1351 = sbr.rel (%p1349) target = $region68
        $region67: #{tpu_custom_call.1} parent=43 // pred_region
          %s1352 = smul.u32 16, %s25
          %s1354 = ssub.s32 2048, 2048
          %1355 = vsyncadd %s1345, %s1354
          %s1356 = smul.addr %s1352, 128
          %s1357 = scalar_lea.hbm %s6, %s1356
          %s1358 = sshll.u32 %s1348, 4
          %s1359 = int_to_ptr.vmem [resolvable:$true] %s1358
          %1364 = dma.vmem_to_hbm [thread:$0]  %s1359, 2048, %s1357, %s1345, 128, 128, 8
        $region68: #{tpu_custom_call.1} parent=43 // pred_fallthru
          _
      $region44: #{tpu_custom_call.1} parent=5 // pred_fallthru
        _
      %p1365 = scmp.le.s32.totalorder 2, %s20
      // Predicated region
      $region69: #{tpu_custom_call.1} parent=5 // pred_check
        %p1366 = pneg %p1365
      $region70: #{tpu_custom_call.1} parent=5 // pred_check_branch
        %1368 = sbr.rel (%p1366) target = $region72
      $region71: #{tpu_custom_call.1} parent=5 // pred_region
        %s1369 = ssub.s32 %s20, 2
        // Predicated region
        $region73: #{tpu_custom_call.1} parent=71 // pred_check
          %p1370 = pneg %p180
        $region74: #{tpu_custom_call.1} parent=71 // pred_check_branch
          %1372 = sbr.rel (%p1370) target = $region76
        $region75: #{tpu_custom_call.1} parent=71 // pred_region
          %s1373 = sand.u32 %s165, 1
          %s1374 = scalar_lea.sflag [#allocation4], %s1373
          %s1375 = sand.u32 %s165, 1
          %s1376 = smul.addr %s1375, 128
          %s1377 = scalar_lea.vmem [#allocation11], %s1376
          %1378 = dma.done %s1374, 2048
        $region76: #{tpu_custom_call.1} parent=71 // pred_fallthru
          _
      $region72: #{tpu_custom_call.1} parent=5 // pred_fallthru
        _
    $region6: #{tpu_custom_call.1} parent=1 // loop_footer
      %s24 = sadd.s32 1, %s20
    $region7: #{tpu_custom_call.1} parent=1 // loop_footer_branch
      %19 = sbr.rel target = $region3
    $region8: #{tpu_custom_call.1} parent=1 // loop_exit
      _
    %1379 = vsyncpa [#allocation3], 1
    %s1380 = scalar_lea.sflag [#allocation3], 1
    %1381 = vsyncpa %s1380, 1
    %1382 = vsyncpa [#allocation6], 1
    %1383 = vsyncpa [#allocation9], 1
    %1384 = vsyncpa [#allocation4], 1
    %s1385 = scalar_lea.sflag [#allocation4], 1
    %1386 = vsyncpa %s1385, 1

</llo_original>
